<compile_context>
chip_gen: v7x
topology: tpu7x:2x2x1
jax: 0.10.0
libtpu: 0.0.40
codegen_flags: <defaults>
</compile_context>

<pallas_src>
import functools

import jax
import jax.numpy as jnp
import numpy as np
from jax import lax
from jax.experimental import pallas as pl
from jax.experimental.pallas import tpu as pltpu


def _round_up(a, b):
    return ((a + b - 1) // b) * b


# ---------------------------------------------------------------------------
# Kernel A: conv-as-matmul + fused per-(sample, channel) batch statistics.
#   grid = (N, S_pad // tm)  -> ("parallel", "arbitrary")
#   o_ref   : (C_out, tm)  bf16 conv tile (lane-dense)
#   sum_ref : (C_out, 1)   per-sample running channel sum        (f32, resident)
#   sq_ref  : (C_out, 1)   per-sample running channel sum-of-sq  (f32, resident)
# No bias add and no padding mask: bias cancels through train-mode BN, and the
# zero-padded S columns then contribute exactly 0 to both statistics.
# ---------------------------------------------------------------------------
def _conv_stats_kernel(w_ref, p_ref, o_ref, sum_ref, sq_ref):
    s_idx = pl.program_id(1)

    y = jnp.dot(w_ref[...], p_ref[...], preferred_element_type=jnp.float32)  # (C_out, tm)
    o_ref[...] = y.astype(o_ref.dtype)     # bf16 intermediate

    @pl.when(s_idx == 0)
    def _():
        sum_ref[...] = jnp.zeros(sum_ref.shape, sum_ref.dtype)
        sq_ref[...] = jnp.zeros(sq_ref.shape, sq_ref.dtype)

    # Cross-lane reductions ride the XLU while the MXU/DMA path is the bottleneck.
    sum_ref[...] += jnp.sum(y, axis=1, keepdims=True)
    sq_ref[...] += jnp.sum(y * y, axis=1, keepdims=True)


# ---------------------------------------------------------------------------
# Kernel B: pre-folded BN affine + ReLU on the bf16 conv intermediate.
# ---------------------------------------------------------------------------
def _bn_relu_kernel(y_ref, scale_ref, shift_ref, o_ref):
    y = y_ref[...].astype(jnp.float32)                       # (C_out, tm_b)
    o_ref[...] = jnp.maximum(y * scale_ref[...] + shift_ref[...], 0.0)


# ---------------------------------------------------------------------------
# im2col in (N, K, S) layout (plain-JAX glue; pure slicing, no conv primitive).
# ---------------------------------------------------------------------------
def _im2col_3d(x, kernel, stride, padding):
    # x: (N, C, D, H, W) -> patches (N, K, S); K = C*kd*kh*kw, S = Do*Ho*Wo.
    n, c, d, h, w = x.shape
    kd = kh = kw = kernel
    pad = padding
    xp = jnp.pad(x, ((0, 0), (0, 0), (pad, pad), (pad, pad), (pad, pad)))
    do = (d + 2 * pad - kd) // stride + 1
    ho = (h + 2 * pad - kh) // stride + 1
    wo = (w + 2 * pad - kw) // stride + 1
    slices = []
    for dz in range(kd):
        for dy in range(kh):
            for dx in range(kw):
                slices.append(
                    xp[:, :,
                       dz: dz + stride * do: stride,
                       dy: dy + stride * ho: stride,
                       dx: dx + stride * wo: stride])        # (N, C, Do, Ho, Wo)
    # kernel offset right after channel so K matches PyTorch weight flatten:
    #   k = c_in*(kd*kh*kw) + (dz*kh*kw + dy*kw + dx)
    patches = jnp.stack(slices, axis=2)                      # (N, C, kvol, Do, Ho, Wo)
    k = c * kd * kh * kw
    s = do * ho * wo
    return patches.reshape(n, k, s), (do, ho, wo)


def _pick_tile_b(s_pad, tm_a, c_out, budget_bytes=8 << 20):
    # Largest multiple of tm_a dividing s_pad while keeping the double-buffered
    # (bf16 in + f32 out) block footprint under budget_bytes (safe on v7x 64 MiB VMEM).
    max_cols = max(tm_a, budget_bytes // max(1, c_out * (2 + 4) * 2))
    for mult in range(s_pad // tm_a, 0, -1):
        cand = tm_a * mult
        if s_pad % cand == 0 and cand <= max_cols:
            return cand
    return tm_a


# ---------------------------------------------------------------------------
# Wrapper: Conv3d + BatchNorm3d(training batch stats) + ReLU
# ---------------------------------------------------------------------------
@functools.partial(jax.jit, static_argnames=("kernel", "stride", "padding"))
def conv3d_block(x, weight, bias, gamma, beta, *, kernel, stride=1, padding=0,
                 eps=1e-5):
    # x: (N, C_in, D, H, W), weight: (C_out, C_in, kd, kh, kw)
    del bias  # Conv bias cancels exactly through train-mode BatchNorm (forward-equal).
    c_out = weight.shape[0]
    n = x.shape[0]

    # TODO(synk): eliminate the 27x im2col HBM blow-up by keeping x in HBM
    # (memory_space=pl.ANY), DMA-ing halo'd input slabs per grid step and
    # accumulating the kernel-offset (C_out x C_in) matmuls into a VMEM f32
    # accumulator; bf16 patches are the interim mitigation.
    patches, (do, ho, wo) = _im2col_3d(x.astype(jnp.bfloat16), kernel, stride, padding)
    _, k, s = patches.shape

    tm_a = max(128, min(512, _round_up(s, 128)))     # M tile for Kernel A (lane axis)
    s_pad = _round_up(s, tm_a)
    if s_pad != s:
        # TODO(synk): handle the ragged S tail in-kernel instead of this pad copy.
        patches = jnp.pad(patches, ((0, 0), (0, 0), (0, s_pad - s)))
    grid_s = s_pad // tm_a

    w2d = weight.reshape(c_out, k).astype(jnp.bfloat16)      # (C_out, K), resident

    # --- Kernel A: conv matmul + fused per-sample BN partial stats ----------
    # N axis is "parallel" (v7x megacore shards it); the per-sample sum/sq partials
    # are indexed by n, so there is no cross-core race.  S axis is "arbitrary"
    # (resident accumulators).
    # NOTE: for large K (= C_in*k^3) add a third "arbitrary" K axis with a VMEM f32
    # accumulator and set vmem_limit_bytes; at these sizes the full-K block fits VMEM.
    conv_out, psum, psq = pl.pallas_call(
        _conv_stats_kernel,
        out_shape=(
            jax.ShapeDtypeStruct((n, c_out, s_pad), jnp.bfloat16),
            jax.ShapeDtypeStruct((n, c_out, 1), jnp.float32),
            jax.ShapeDtypeStruct((n, c_out, 1), jnp.float32),
        ),
        grid_spec=pltpu.PrefetchScalarGridSpec(
            num_scalar_prefetch=0,
            grid=(n, grid_s),
            in_specs=[
                pl.BlockSpec((c_out, k), lambda ni, si: (0, 0)),            # weight
                pl.BlockSpec((None, k, tm_a), lambda ni, si: (ni, 0, si)),  # patches tile
            ],
            out_specs=[
                pl.BlockSpec((None, c_out, tm_a), lambda ni, si: (ni, 0, si)),  # conv out
                pl.BlockSpec((None, c_out, 1), lambda ni, si: (ni, 0, 0)),      # sum partial
                pl.BlockSpec((None, c_out, 1), lambda ni, si: (ni, 0, 0)),      # sumsq partial
            ],
        ),
        compiler_params=pltpu.CompilerParams(
            dimension_semantics=("parallel", "arbitrary")),
    )(w2d, patches)

    # --- tiny plain-JAX epilogue: reduce partials, fold BN into scale/shift --
    m_valid = n * s
    ch_sum = jnp.sum(psum, axis=0)                            # (C_out, 1)
    ch_sq = jnp.sum(psq, axis=0)
    mean = ch_sum / m_valid
    # TODO(synk): single-pass E[y^2]-E[y]^2 can cancel if conv outputs carry large
    # per-channel offsets; switch to shifted moments if that regime ever appears.
    var = jnp.maximum(ch_sq / m_valid - mean * mean, 0.0)     # biased var, clamped
    inv_std = lax.rsqrt(var + eps)
    scale = gamma.reshape(c_out, 1).astype(jnp.float32) * inv_std
    shift = beta.reshape(c_out, 1).astype(jnp.float32) - mean * scale

    # --- Kernel B: y*scale + shift, ReLU; writes (N, C_out, S) directly ------
    tm_b = _pick_tile_b(s_pad, tm_a, c_out)
    out3d = pl.pallas_call(
        _bn_relu_kernel,
        out_shape=jax.ShapeDtypeStruct((n, c_out, s_pad), jnp.float32),
        grid_spec=pltpu.PrefetchScalarGridSpec(
            num_scalar_prefetch=0,
            grid=(n, s_pad // tm_b),
            in_specs=[
                pl.BlockSpec((None, c_out, tm_b), lambda ni, si: (ni, 0, si)),
                pl.BlockSpec((c_out, 1), lambda ni, si: (0, 0)),
                pl.BlockSpec((c_out, 1), lambda ni, si: (0, 0)),
            ],
            out_specs=pl.BlockSpec((None, c_out, tm_b), lambda ni, si: (ni, 0, si)),
        ),
        compiler_params=pltpu.CompilerParams(
            dimension_semantics=("parallel", "parallel")),
    )(conv_out, scale, shift)

    # already in (N, C_out, S) layout -> just drop S padding and reshape (no transpose)
    out = out3d[:, :, :s].reshape(n, c_out, do, ho, wo)
    return out.astype(x.dtype)


# ---------------------------------------------------------------------------
# Plain-JAX f32 reference (for correctness check)
# ---------------------------------------------------------------------------
def _reference(x, weight, bias, gamma, beta, kernel, stride, padding, eps=1e-5):
    dn = lax.conv_dimension_numbers(x.shape, weight.shape,
                                    ("NCDHW", "OIDHW", "NCDHW"))
    y = lax.conv_general_dilated(
        x, weight, window_strides=(stride,) * 3,
        padding=[(padding, padding)] * 3, dimension_numbers=dn)
    y = y + bias.reshape(1, -1, 1, 1, 1)
    mean = jnp.mean(y, axis=(0, 2, 3, 4), keepdims=True)
    var = jnp.mean((y - mean) ** 2, axis=(0, 2, 3, 4), keepdims=True)
    y = (y - mean) * lax.rsqrt(var + eps)
    y = y * gamma.reshape(1, -1, 1, 1, 1) + beta.reshape(1, -1, 1, 1, 1)
    return jnp.maximum(y, 0.0)


if __name__ == "__main__":
    # Small, deterministic example: Conv3dBlock(in=4, out=8, kernel=3, stride=1, padding=1)
    N, C_IN, D, H, W = 2, 4, 8, 8, 8
    C_OUT, KSZ, STRIDE, PAD = 8, 3, 1, 1

    key = jax.random.PRNGKey(0)
    kx, kw, kb = jax.random.split(key, 3)

    x = jax.random.normal(kx, (N, C_IN, D, H, W), dtype=jnp.float32)

    # Conv3d parameters (deterministic synthetic init, same shapes as PyTorch).
    fan_in = C_IN * KSZ * KSZ * KSZ
    bound = 1.0 / np.sqrt(fan_in)
    weight = jax.random.uniform(kw, (C_OUT, C_IN, KSZ, KSZ, KSZ),
                                minval=-bound, maxval=bound, dtype=jnp.float32)
    bias = jax.random.uniform(kb, (C_OUT,), minval=-bound, maxval=bound,
                              dtype=jnp.float32)
    # BatchNorm3d default affine init: gamma=1, beta=0.
    gamma = jnp.ones((C_OUT,), jnp.float32)
    beta = jnp.zeros((C_OUT,), jnp.float32)

    out = conv3d_block(x, weight, bias, gamma, beta,
                       kernel=KSZ, stride=STRIDE, padding=PAD)
    out = jax.block_until_ready(out)

    ref = _reference(x, weight, bias, gamma, beta, KSZ, STRIDE, PAD)
    # bf16 matmul operands + bf16 conv intermediate -> loosened tolerance vs f32 ref.
    np.testing.assert_allclose(np.asarray(out), np.asarray(ref),
                               rtol=2e-2, atol=3e-2)

    print("KERNEL_OK")
</pallas_src>

<mosaic_0001>
module attributes {stable_mosaic.version = 11 : i64} {
  func.func @_conv_stats_kernel(%arg0: i32, %arg1: i32, %arg2: memref<8x108xbf16, #tpu.memory_space<vmem>>, %arg3: memref<1x108x512xbf16, #tpu.memory_space<vmem>>, %arg4: memref<1x8x512xbf16, #tpu.memory_space<vmem>>, %arg5: memref<1x8x1xf32, #tpu.memory_space<vmem>>, %arg6: memref<1x8x1xf32, #tpu.memory_space<vmem>>) attributes {dimension_semantics = [#tpu.dimension_semantics<parallel>, #tpu.dimension_semantics<arbitrary>], iteration_bounds = array<i64: 2, 1>, scalar_prefetch = 0 : i64, scratch_operands = 0 : i64, tpu.core_type = #tpu.core_type<tc>, window_params = [{pipeline_mode = #tpu.pipeline_mode<synchronous>, transform_indices = @transform_0, window_bounds = array<i64: 8, 108>}, {transform_indices = @transform_1, window_bounds = array<i64: 1, 108, 512>}, {transform_indices = @transform_2, window_bounds = array<i64: 1, 8, 512>}, {transform_indices = @transform_3, window_bounds = array<i64: 1, 8, 1>}, {transform_indices = @transform_4, window_bounds = array<i64: 1, 8, 1>}]} {
    %c0 = arith.constant 0 : index
    %c0_0 = arith.constant 0 : index
    %0 = vector.load %arg2[%c0, %c0_0] : memref<8x108xbf16, #tpu.memory_space<vmem>>, vector<8x108xbf16>
    %c0_1 = arith.constant 0 : index
    %c0_2 = arith.constant 0 : index
    %c0_3 = arith.constant 0 : index
    %1 = vector.load %arg3[%c0_1, %c0_2, %c0_3] : memref<1x108x512xbf16, #tpu.memory_space<vmem>>, vector<1x108x512xbf16>
    %2 = vector.shape_cast %1 : vector<1x108x512xbf16> to vector<108x512xbf16>
    %cst = arith.constant dense<0.000000e+00> : vector<8x512xf32>
    %3 = tpu.matmul %0, %2, %cst {dimension_numbers = #tpu.dot_dimension_numbers<[1], [0], [0], [1], [0, 0, 1, 1], [], []>} : vector<8x108xbf16>, vector<108x512xbf16>, vector<8x512xf32> -> vector<8x512xf32>
    %4 = arith.truncf %3 : vector<8x512xf32> to vector<8x512xbf16>
    %c0_4 = arith.constant 0 : index
    %c0_5 = arith.constant 0 : index
    %c0_6 = arith.constant 0 : index
    %5 = vector.load %arg4[%c0_4, %c0_5, %c0_6] : memref<1x8x512xbf16, #tpu.memory_space<vmem>>, vector<1x8x512xbf16>
    %6 = vector.shape_cast %5 : vector<1x8x512xbf16> to vector<8x512xbf16>
    %7 = vector.shape_cast %4 : vector<8x512xbf16> to vector<1x8x512xbf16>
    tpu.vector_store %arg4[%c0_4, %c0_5, %c0_6], %7 {strides = array<i32>} : memref<1x8x512xbf16, #tpu.memory_space<vmem>>, vector<1x8x512xbf16>,
    %c0_i32 = arith.constant 0 : i32
    %8 = arith.cmpi eq, %arg1, %c0_i32 : i32
    %9 = arith.extui %8 : i1 to i32
    %c0_i32_7 = arith.constant 0 : i32
    %10 = arith.cmpi ne, %9, %c0_i32_7 : i32
    scf.if %10 {
      %cst_22 = arith.constant 0.000000e+00 : f32
      %28 = vector.broadcast %cst_22 : f32 to vector<8x1xf32>
      %c0_23 = arith.constant 0 : index
      %c0_24 = arith.constant 0 : index
      %c0_25 = arith.constant 0 : index
      %29 = vector.load %arg5[%c0_23, %c0_24, %c0_25] : memref<1x8x1xf32, #tpu.memory_space<vmem>>, vector<1x8x1xf32>
      %30 = vector.shape_cast %29 : vector<1x8x1xf32> to vector<8x1xf32>
      %31 = vector.shape_cast %28 : vector<8x1xf32> to vector<1x8x1xf32>
      tpu.vector_store %arg5[%c0_23, %c0_24, %c0_25], %31 {strides = array<i32>} : memref<1x8x1xf32, #tpu.memory_space<vmem>>, vector<1x8x1xf32>,
      %cst_26 = arith.constant 0.000000e+00 : f32
      %32 = vector.broadcast %cst_26 : f32 to vector<8x1xf32>
      %c0_27 = arith.constant 0 : index
      %c0_28 = arith.constant 0 : index
      %c0_29 = arith.constant 0 : index
      %33 = vector.load %arg6[%c0_27, %c0_28, %c0_29] : memref<1x8x1xf32, #tpu.memory_space<vmem>>, vector<1x8x1xf32>
      %34 = vector.shape_cast %33 : vector<1x8x1xf32> to vector<8x1xf32>
      %35 = vector.shape_cast %32 : vector<8x1xf32> to vector<1x8x1xf32>
      tpu.vector_store %arg6[%c0_27, %c0_28, %c0_29], %35 {strides = array<i32>} : memref<1x8x1xf32, #tpu.memory_space<vmem>>, vector<1x8x1xf32>,
    } else {
    }
    %c0_8 = arith.constant 0 : index
    %c0_9 = arith.constant 0 : index
    %c0_10 = arith.constant 0 : index
    %11 = vector.load %arg5[%c0_8, %c0_9, %c0_10] : memref<1x8x1xf32, #tpu.memory_space<vmem>>, vector<1x8x1xf32>
    %12 = vector.shape_cast %11 : vector<1x8x1xf32> to vector<8x1xf32>
    %cst_11 = arith.constant dense<0.000000e+00> : vector<8xf32>
    %13 = vector.multi_reduction <add>, %3, %cst_11 [1] : vector<8x512xf32> to vector<8xf32>
    %14 = vector.shape_cast %13 : vector<8xf32> to vector<8x1xf32>
    %15 = arith.addf %12, %14 : vector<8x1xf32>
    %c0_12 = arith.constant 0 : index
    %c0_13 = arith.constant 0 : index
    %c0_14 = arith.constant 0 : index
    %16 = vector.load %arg5[%c0_12, %c0_13, %c0_14] : memref<1x8x1xf32, #tpu.memory_space<vmem>>, vector<1x8x1xf32>
    %17 = vector.shape_cast %16 : vector<1x8x1xf32> to vector<8x1xf32>
    %18 = vector.shape_cast %15 : vector<8x1xf32> to vector<1x8x1xf32>
    tpu.vector_store %arg5[%c0_12, %c0_13, %c0_14], %18 {strides = array<i32>} : memref<1x8x1xf32, #tpu.memory_space<vmem>>, vector<1x8x1xf32>,
    %c0_15 = arith.constant 0 : index
    %c0_16 = arith.constant 0 : index
    %c0_17 = arith.constant 0 : index
    %19 = vector.load %arg6[%c0_15, %c0_16, %c0_17] : memref<1x8x1xf32, #tpu.memory_space<vmem>>, vector<1x8x1xf32>
    %20 = vector.shape_cast %19 : vector<1x8x1xf32> to vector<8x1xf32>
    %21 = arith.mulf %3, %3 : vector<8x512xf32>
    %cst_18 = arith.constant dense<0.000000e+00> : vector<8xf32>
    %22 = vector.multi_reduction <add>, %21, %cst_18 [1] : vector<8x512xf32> to vector<8xf32>
    %23 = vector.shape_cast %22 : vector<8xf32> to vector<8x1xf32>
    %24 = arith.addf %20, %23 : vector<8x1xf32>
    %c0_19 = arith.constant 0 : index
    %c0_20 = arith.constant 0 : index
    %c0_21 = arith.constant 0 : index
    %25 = vector.load %arg6[%c0_19, %c0_20, %c0_21] : memref<1x8x1xf32, #tpu.memory_space<vmem>>, vector<1x8x1xf32>
    %26 = vector.shape_cast %25 : vector<1x8x1xf32> to vector<8x1xf32>
    %27 = vector.shape_cast %24 : vector<8x1xf32> to vector<1x8x1xf32>
    tpu.vector_store %arg6[%c0_19, %c0_20, %c0_21], %27 {strides = array<i32>} : memref<1x8x1xf32, #tpu.memory_space<vmem>>, vector<1x8x1xf32>,
    return
  }
  func.func @transform_0(%arg0: i32, %arg1: i32) -> (i32, i32) {
    %c0_i32 = arith.constant 0 : i32
    %c0_i32_0 = arith.constant 0 : i32
    %c0_i32_1 = arith.constant 0 : i32
    return %c0_i32, %c0_i32_0 : i32, i32
  }
  func.func @transform_1(%arg0: i32, %arg1: i32) -> (i32, i32, i32) {
    %c0_i32 = arith.constant 0 : i32
    %c0_i32_0 = arith.constant 0 : i32
    return %arg0, %c0_i32, %arg1 : i32, i32, i32
  }
  func.func @transform_2(%arg0: i32, %arg1: i32) -> (i32, i32, i32) {
    %c0_i32 = arith.constant 0 : i32
    %c0_i32_0 = arith.constant 0 : i32
    return %arg0, %c0_i32, %arg1 : i32, i32, i32
  }
  func.func @transform_3(%arg0: i32, %arg1: i32) -> (i32, i32, i32) {
    %c0_i32 = arith.constant 0 : i32
    %c0_i32_0 = arith.constant 0 : i32
    %c0_i32_1 = arith.constant 0 : i32
    return %arg0, %c0_i32, %c0_i32_0 : i32, i32, i32
  }
  func.func @transform_4(%arg0: i32, %arg1: i32) -> (i32, i32, i32) {
    %c0_i32 = arith.constant 0 : i32
    %c0_i32_0 = arith.constant 0 : i32
    %c0_i32_1 = arith.constant 0 : i32
    return %arg0, %c0_i32, %c0_i32_0 : i32, i32, i32
  }
}

module attributes {stable_mosaic.version = 11 : i64} {
  func.func @_bn_relu_kernel(%arg0: i32, %arg1: i32, %arg2: memref<1x8x512xbf16, #tpu.memory_space<vmem>>, %arg3: memref<8x1xf32, #tpu.memory_space<vmem>>, %arg4: memref<8x1xf32, #tpu.memory_space<vmem>>, %arg5: memref<1x8x512xf32, #tpu.memory_space<vmem>>) attributes {dimension_semantics = [#tpu.dimension_semantics<parallel>, #tpu.dimension_semantics<parallel>], iteration_bounds = array<i64: 2, 1>, scalar_prefetch = 0 : i64, scratch_operands = 0 : i64, tpu.core_type = #tpu.core_type<tc>, window_params = [{transform_indices = @transform_0, window_bounds = array<i64: 1, 8, 512>}, {pipeline_mode = #tpu.pipeline_mode<synchronous>, transform_indices = @transform_1, window_bounds = array<i64: 8, 1>}, {pipeline_mode = #tpu.pipeline_mode<synchronous>, transform_indices = @transform_2, window_bounds = array<i64: 8, 1>}, {transform_indices = @transform_3, window_bounds = array<i64: 1, 8, 512>}]} {
    %c0 = arith.constant 0 : index
    %c0_0 = arith.constant 0 : index
    %c0_1 = arith.constant 0 : index
    %0 = vector.load %arg2[%c0, %c0_0, %c0_1] : memref<1x8x512xbf16, #tpu.memory_space<vmem>>, vector<1x8x512xbf16>
    %1 = vector.shape_cast %0 : vector<1x8x512xbf16> to vector<8x512xbf16>
    %2 = arith.extf %1 : vector<8x512xbf16> to vector<8x512xf32>
    %c0_2 = arith.constant 0 : index
    %c0_3 = arith.constant 0 : index
    %3 = vector.load %arg3[%c0_2, %c0_3] : memref<8x1xf32, #tpu.memory_space<vmem>>, vector<8x1xf32>
    %4 = vector.broadcast %3 : vector<8x1xf32> to vector<8x512xf32>
    %5 = arith.mulf %2, %4 : vector<8x512xf32>
    %c0_4 = arith.constant 0 : index
    %c0_5 = arith.constant 0 : index
    %6 = vector.load %arg4[%c0_4, %c0_5] : memref<8x1xf32, #tpu.memory_space<vmem>>, vector<8x1xf32>
    %7 = vector.broadcast %6 : vector<8x1xf32> to vector<8x512xf32>
    %8 = arith.addf %5, %7 : vector<8x512xf32>
    %cst = arith.constant 0.000000e+00 : f32
    %9 = vector.broadcast %cst : f32 to vector<8x512xf32>
    %10 = arith.maximumf %8, %9 : vector<8x512xf32>
    %c0_6 = arith.constant 0 : index
    %c0_7 = arith.constant 0 : index
    %c0_8 = arith.constant 0 : index
    %11 = vector.load %arg5[%c0_6, %c0_7, %c0_8] : memref<1x8x512xf32, #tpu.memory_space<vmem>>, vector<1x8x512xf32>
    %12 = vector.shape_cast %11 : vector<1x8x512xf32> to vector<8x512xf32>
    %13 = vector.shape_cast %10 : vector<8x512xf32> to vector<1x8x512xf32>
    tpu.vector_store %arg5[%c0_6, %c0_7, %c0_8], %13 {strides = array<i32>} : memref<1x8x512xf32, #tpu.memory_space<vmem>>, vector<1x8x512xf32>,
    return
  }
  func.func @transform_0(%arg0: i32, %arg1: i32) -> (i32, i32, i32) {
    %c0_i32 = arith.constant 0 : i32
    %c0_i32_0 = arith.constant 0 : i32
    return %arg0, %c0_i32, %arg1 : i32, i32, i32
  }
  func.func @transform_1(%arg0: i32, %arg1: i32) -> (i32, i32) {
    %c0_i32 = arith.constant 0 : i32
    %c0_i32_0 = arith.constant 0 : i32
    %c0_i32_1 = arith.constant 0 : i32
    return %c0_i32, %c0_i32_0 : i32, i32
  }
  func.func @transform_2(%arg0: i32, %arg1: i32) -> (i32, i32) {
    %c0_i32 = arith.constant 0 : i32
    %c0_i32_0 = arith.constant 0 : i32
    %c0_i32_1 = arith.constant 0 : i32
    return %c0_i32, %c0_i32_0 : i32, i32
  }
  func.func @transform_3(%arg0: i32, %arg1: i32) -> (i32, i32, i32) {
    %c0_i32 = arith.constant 0 : i32
    %c0_i32_0 = arith.constant 0 : i32
    return %arg0, %c0_i32, %arg1 : i32, i32, i32
  }
}

</mosaic_0001>

<llo_original>
// kernel: conv3d_block.3
$region0: #{conv3d_block.3}
  #allocation0 [shape = 'u32[]', space=smem, size = 0x4, offset = 0x4, fixed_abs, tag = 'smem constant byte address 0x4 - core index']
  #allocation1 [shape = 'u32[144,128]{1,0:T(1,128)}', space=vmem, size = 0x12000, scoped, tag = 'internal scratch']
  %s0 = inlined_call_operand.vmem [shape: bf16[2,8,512], index: 0, kind: input, shape index: {}]
  %s1 = inlined_call_operand.vmem [shape: f32[8,1], index: 1, kind: input, shape index: {}]
  %s2 = inlined_call_operand.vmem [shape: f32[8,1], index: 2, kind: input, shape index: {}]
  %s3 = inlined_call_operand.vmem [shape: f32[2,8,512], index: 3, kind: output, shape index: {}]
  %s4 = sld [smem:[#allocation0]]
  $region45: #{conv3d_block.3} parent=0
    _
  %s6 = ssub.s32 1, %s4
  %s7 = scalar_select 0, %s6, %s4
  loop: start=0, step=1, limit=4
  $region2: #{conv3d_block.3} parent=0 // loop_pre_header
    _
  $region3: #{conv3d_block.3} parent=0 // loop_header
    %s9 = sphi 0, %s13
    %p10 = scmp.ge.s32.totalorder %s9, 4
    %s16 = sphi 0, %s28
    %s17 = sphi 0, %s24
    %s18 = sphi 0, %s16
    %s19 = sphi 0, %s17
    %s20 = sphi 0, %s18
    %s21 = sphi 0, %s19
    %s33 = sphi 0, %s35
    %s36 = sphi 0, %s33
    %s37 = sphi 0, %s36
    %s53 = sphi 0, %s37
    %s57 = sphi 0, %s57
    %s59 = sphi 0, %s57
    %s60 = sphi 0, %s59
    %s74 = sphi 0, %s60
    %s78 = sphi 0, %s78
    %s80 = sphi 0, %s78
    %s81 = sphi 0, %s80
    %s95 = sphi 0, %s81
    %s103 = sphi 0, %s105
    %s106 = sphi 0, %s103
    %s107 = sphi 0, %s106
    %s123 = sphi 0, %s107
  $region4: #{conv3d_block.3} parent=0 // loop_header_branch
    %12 = sbr.rel (%p10) target = $region8
  $region5: #{conv3d_block.3} parent=0 // loop_body
    %s14 = ssub.s32 %s9, 1
    %s15 = ssub.s32 %s9, 2
    %s22 = sadd.s32 1, %s17
    %p23 = scmp.ge.s32.totalorder %s22, 1
    %s24 = scalar_select %p23, 0, %s22
    %s25 = sadd.s32 1, %s16
    %s26 = scalar_select %p23, %s25, %s16
    %p27 = scmp.ge.s32.totalorder %s26, 2
    %s28 = scalar_select %p27, 0, %s26
    %s29 = ssub.s32 %s16, %s28
    %s30 = ssub.s32 %s17, %s24
    %s31 = sor.u32 %s29, %s30
    %p32 = scmp.eq.s32.totalorder %s31, 0
    %s34 = sadd.s32 %s33, 1
    %s35 = scalar_select %p32, %s33, %s34
    %p38 = pneg %p32
    %p39 = scmp.eq.s32.totalorder %s9, 1
    %p40 = por %p38, %p39
    %p41 = scmp.ne.s32.totalorder %s33, %s36
    %p42 = scmp.eq.s32.totalorder %s9, 0
    %p43 = por %p41, %p42
    %p44 = scmp.ne.s32.totalorder %s33, %s36
    %p45 = scmp.eq.s32.totalorder %s14, 1
    %p46 = por %p44, %p45
    %p47 = scmp.ne.s32.totalorder %s36, %s37
    %p48 = scmp.eq.s32.totalorder %s14, 0
    %p49 = por %p47, %p48
    %p50 = scmp.ne.s32.totalorder %s36, %s37
    %p51 = scmp.eq.s32.totalorder %s15, 1
    %p52 = por %p50, %p51
    %p54 = scmp.ne.s32.totalorder %s37, %s53
    %p55 = scmp.eq.s32.totalorder %s15, 0
    %p56 = por %p54, %p55
    %s58 = sadd.s32 %s57, 1
    %p61 = scmp.eq.s32.totalorder %s9, 1
    %p62 = scmp.ne.s32.totalorder %s57, %s59
    %p63 = scmp.eq.s32.totalorder %s9, 0
    %p64 = por %p62, %p63
    %p65 = scmp.ne.s32.totalorder %s57, %s59
    %p66 = scmp.eq.s32.totalorder %s14, 1
    %p67 = por %p65, %p66
    %p68 = scmp.ne.s32.totalorder %s59, %s60
    %p69 = scmp.eq.s32.totalorder %s14, 0
    %p70 = por %p68, %p69
    %p71 = scmp.ne.s32.totalorder %s59, %s60
    %p72 = scmp.eq.s32.totalorder %s15, 1
    %p73 = por %p71, %p72
    %p75 = scmp.ne.s32.totalorder %s60, %s74
    %p76 = scmp.eq.s32.totalorder %s15, 0
    %p77 = por %p75, %p76
    %s79 = sadd.s32 %s78, 1
    %p82 = scmp.eq.s32.totalorder %s9, 1
    %p83 = scmp.ne.s32.totalorder %s78, %s80
    %p84 = scmp.eq.s32.totalorder %s9, 0
    %p85 = por %p83, %p84
    %p86 = scmp.ne.s32.totalorder %s78, %s80
    %p87 = scmp.eq.s32.totalorder %s14, 1
    %p88 = por %p86, %p87
    %p89 = scmp.ne.s32.totalorder %s80, %s81
    %p90 = scmp.eq.s32.totalorder %s14, 0
    %p91 = por %p89, %p90
    %p92 = scmp.ne.s32.totalorder %s80, %s81
    %p93 = scmp.eq.s32.totalorder %s15, 1
    %p94 = por %p92, %p93
    %p96 = scmp.ne.s32.totalorder %s81, %s95
    %p97 = scmp.eq.s32.totalorder %s15, 0
    %p98 = por %p96, %p97
    %s99 = ssub.s32 %s16, %s28
    %s100 = ssub.s32 %s17, %s24
    %s101 = sor.u32 %s99, %s100
    %p102 = scmp.eq.s32.totalorder %s101, 0
    %s104 = sadd.s32 %s103, 1
    %s105 = scalar_select %p102, %s103, %s104
    %p108 = pneg %p102
    %p109 = scmp.eq.s32.totalorder %s9, 1
    %p110 = por %p108, %p109
    %p111 = scmp.ne.s32.totalorder %s103, %s106
    %p112 = scmp.eq.s32.totalorder %s9, 0
    %p113 = por %p111, %p112
    %p114 = scmp.ne.s32.totalorder %s103, %s106
    %p115 = scmp.eq.s32.totalorder %s14, 1
    %p116 = por %p114, %p115
    %p117 = scmp.ne.s32.totalorder %s106, %s107
    %p118 = scmp.eq.s32.totalorder %s14, 0
    %p119 = por %p117, %p118
    %p120 = scmp.ne.s32.totalorder %s106, %s107
    %p121 = scmp.eq.s32.totalorder %s15, 1
    %p122 = por %p120, %p121
    %p124 = scmp.ne.s32.totalorder %s107, %s123
    %p125 = scmp.eq.s32.totalorder %s15, 0
    %p126 = por %p124, %p125
    %p127 = scmp.le.s32.totalorder 1, %s9
    %p128 = scmp.lt.s32.totalorder %s9, 3
    %p129 = pnand %p127, %p128
    %p130 = pneg %p129
    // Predicated region
    $region9: #{conv3d_block.3} parent=5 // pred_check
      _
    $region10: #{conv3d_block.3} parent=5 // pred_check_branch
      %132 = sbr.rel (%p129) target = $region12
    $region11: #{conv3d_block.3} parent=5 // pred_region
      %s133 = ssub.s32 %s9, 1
      // Predicated region
      $region13: #{conv3d_block.3} parent=11 // pred_check
        %p134 = pneg %p70
      $region14: #{conv3d_block.3} parent=11 // pred_check_branch
        %136 = sbr.rel (%p134) target = $region16
      $region15: #{conv3d_block.3} parent=11 // pred_region
        _
      $region16: #{conv3d_block.3} parent=11 // pred_fallthru
        _
      // Predicated region
      $region17: #{conv3d_block.3} parent=11 // pred_check
        %p137 = pneg %p91
      $region18: #{conv3d_block.3} parent=11 // pred_check_branch
        %139 = sbr.rel (%p137) target = $region20
      $region19: #{conv3d_block.3} parent=11 // pred_region
        _
      $region20: #{conv3d_block.3} parent=11 // pred_fallthru
        _
    $region12: #{conv3d_block.3} parent=5 // pred_fallthru
      _
    %p140 = scmp.lt.s32.totalorder %s9, 2
    // Predicated region
    $region21: #{conv3d_block.3} parent=5 // pred_check
      %p141 = pneg %p140
    $region22: #{conv3d_block.3} parent=5 // pred_check_branch
      %143 = sbr.rel (%p141) target = $region24
    $region23: #{conv3d_block.3} parent=5 // pred_region
      // Predicated region
      $region25: #{conv3d_block.3} parent=23 // pred_check
        %p144 = pneg %p43
      $region26: #{conv3d_block.3} parent=23 // pred_check_branch
        %146 = sbr.rel (%p144) target = $region28
      $region27: #{conv3d_block.3} parent=23 // pred_region
        %s147 = smul.u32 4, %s17
        %p148 = scmp.lt.s32.totalorder %s16, 1
        %s149 = scalar_select %p148, %s16, 1
        %p150 = scmp.lt.s32.totalorder %s147, 3
        %s151 = scalar_select %p150, %s147, 3
        %s152 = smul.addr %s149, 4
        %s153 = sadd.s32 %s151, %s152
        %s154 = smul.addr %s153, 4
        %s155 = scalar_lea.vmem %s0, %s154
        %s156 = smul.u32 4, %s17
      $region28: #{conv3d_block.3} parent=23 // pred_fallthru
        _
    $region24: #{conv3d_block.3} parent=5 // pred_fallthru
      _
    %p157 = scmp.le.s32.totalorder 1, %s9
    %p158 = scmp.lt.s32.totalorder %s9, 3
    %p159 = pnand %p157, %p158
    %p160 = pneg %p159
    // Predicated region
    $region29: #{conv3d_block.3} parent=5 // pred_check
      _
    $region30: #{conv3d_block.3} parent=5 // pred_check_branch
      %162 = sbr.rel (%p159) target = $region32
    $region31: #{conv3d_block.3} parent=5 // pred_region
      %s163 = ssub.s32 %s9, 1
      %s164 = smul.u32 4, %s19
      %p165 = scmp.lt.s32.totalorder %s18, 1
      %s166 = scalar_select %p165, %s18, 1
      %p167 = scmp.lt.s32.totalorder %s164, 3
      %s168 = scalar_select %p167, %s164, 3
      %s169 = smul.addr %s166, 4
      %s170 = sadd.s32 %s168, %s169
      %s171 = smul.addr %s170, 4
      %s172 = scalar_lea.vmem %s0, %s171
      %p173 = pneg %p49
      %p174 = pneg %p46
      %p175 = pneg %p70
      %p176 = pneg %p67
      %p177 = pneg %p91
      %p178 = pneg %p88
      %p179 = pneg %p119
      %p180 = pneg %p116
      %s181 = smul.u32 4, %s19
      %p182 = scmp.lt.s32.totalorder %s18, 1
      %s183 = scalar_select %p182, %s18, 1
      %p184 = scmp.lt.s32.totalorder %s181, 3
      %s185 = scalar_select %p184, %s181, 3
      %s186 = smul.addr %s183, 4
      %s187 = sadd.s32 %s185, %s186
      %s188 = smul.addr %s187, 8
      %s189 = scalar_lea.vmem %s3, %s188
      %s190 = smul.u32 4, %s19
      %p191 = scmp.lt.s32.totalorder %s18, 1
      %s192 = scalar_select %p191, %s18, 1
      %p193 = scmp.lt.s32.totalorder %s190, 3
      %s194 = scalar_select %p193, %s190, 3
      %s195 = smul.addr %s192, 4
      %s196 = sadd.s32 %s194, %s195
      %s197 = smul.addr %s196, 4
      %s198 = scalar_lea.vmem %s0, %s197
      %s199 = smul.u32 4, %s19
      %s200 = smul.u32 4, %s19
      %p201 = scmp.lt.s32.totalorder %s18, 1
      %s202 = scalar_select %p201, %s18, 1
      %p203 = scmp.lt.s32.totalorder %s200, 3
      %s204 = scalar_select %p203, %s200, 3
      %s205 = smul.addr %s202, 4
      %s206 = sadd.s32 %s204, %s205
      %s207 = smul.addr %s206, 8
      %s208 = scalar_lea.vmem %s3, %s207
      %s209 = smul.u32 4, %s19
      %v210 = vld [vmem:[%s198] sm:$0xff]
      %v211 = vld [vmem:[%s198 + $0x8] sm:$0xff]
      %v212 = vunpack.c.l.bf16 %v210
      %v213 = vunpack.c.h.bf16 %v210
      %v214 = vunpack.c.l.bf16 %v211
      %v215 = vunpack.c.h.bf16 %v211
      %v216 = vld [vmem:[%s1] sm:$0xff]
      %218 = vset.pattern.permute.xlu0 0
      %219 = vperm.xlu0 %218, %v216
      %v220 = vpop.permute.xlu0 %219
      %v222 = vmul.f32 %v212, %v220
      %v223 = vmul.f32 %v213, %v220
      %v224 = vmul.f32 %v214, %v220
      %v225 = vmul.f32 %v215, %v220
      %v226 = vld [vmem:[%s2] sm:$0xff]
      %228 = vset.pattern.permute.xlu0 0
      %229 = vperm.xlu0 %228, %v226
      %v230 = vpop.permute.xlu0 %229
      %v232 = vadd.f32 %v222, %v230
      %v233 = vadd.f32 %v223, %v230
      %v234 = vadd.f32 %v224, %v230
      %v235 = vadd.f32 %v225, %v230
      %v236 = vmax.f32 %v232, 0.0
      %v237 = vmax.f32 %v233, 0.0
      %v238 = vmax.f32 %v234, 0.0
      %v239 = vmax.f32 %v235, 0.0
      %240 = vst [vmem:[%s208] sm:$0xff] %v236
      %241 = vst [vmem:[%s208 + $0x8] sm:$0xff] %v237
      %242 = vst [vmem:[%s208 + $0x10] sm:$0xff] %v238
      %243 = vst [vmem:[%s208 + $0x18] sm:$0xff] %v239
      %s244 = smul.u32 4, %s19
      %p245 = scmp.lt.s32.totalorder %s18, 1
      %s246 = scalar_select %p245, %s18, 1
      %p247 = scmp.lt.s32.totalorder %s244, 3
      %s248 = scalar_select %p247, %s244, 3
      %s249 = smul.addr %s246, 4
      %s250 = sadd.s32 %s248, %s249
      %s251 = smul.addr %s250, 8
      %s252 = scalar_lea.vmem %s3, %s251
      // Predicated region
      $region33: #{conv3d_block.3} parent=31 // pred_check
        %p253 = pneg %p116
      $region34: #{conv3d_block.3} parent=31 // pred_check_branch
        %255 = sbr.rel (%p253) target = $region36
      $region35: #{conv3d_block.3} parent=31 // pred_region
        %s256 = smul.u32 4, %s19
      $region36: #{conv3d_block.3} parent=31 // pred_fallthru
        _
    $region32: #{conv3d_block.3} parent=5 // pred_fallthru
      _
    %p257 = scmp.le.s32.totalorder 2, %s9
    // Predicated region
    $region37: #{conv3d_block.3} parent=5 // pred_check
      %p258 = pneg %p257
    $region38: #{conv3d_block.3} parent=5 // pred_check_branch
      %260 = sbr.rel (%p258) target = $region40
    $region39: #{conv3d_block.3} parent=5 // pred_region
      %s261 = ssub.s32 %s9, 2
      // Predicated region
      $region41: #{conv3d_block.3} parent=39 // pred_check
        %p262 = pneg %p122
      $region42: #{conv3d_block.3} parent=39 // pred_check_branch
        %264 = sbr.rel (%p262) target = $region44
      $region43: #{conv3d_block.3} parent=39 // pred_region
        %s265 = smul.u32 4, %s21
        %p266 = scmp.lt.s32.totalorder %s20, 1
        %s267 = scalar_select %p266, %s20, 1
        %p268 = scmp.lt.s32.totalorder %s265, 3
        %s269 = scalar_select %p268, %s265, 3
        %s270 = smul.addr %s267, 4
        %s271 = sadd.s32 %s269, %s270
        %s272 = smul.addr %s271, 8
        %s273 = scalar_lea.vmem %s3, %s272
      $region44: #{conv3d_block.3} parent=39 // pred_fallthru
        _
    $region40: #{conv3d_block.3} parent=5 // pred_fallthru
      _
  $region6: #{conv3d_block.3} parent=0 // loop_footer
    %s13 = sadd.s32 1, %s9
  $region7: #{conv3d_block.3} parent=0 // loop_footer_branch
    %8 = sbr.rel target = $region3
  $region8: #{conv3d_block.3} parent=0 // loop_exit
    _

// kernel: conv3d_block.2
$region0: #{conv3d_block.2}
  #allocation0 [shape = 'u32[]', space=smem, size = 0x4, offset = 0x4, fixed_abs, tag = 'smem constant byte address 0x4 - core index']
  #allocation1 [shape = 'u32[144,128]{1,0:T(1,128)}', space=vmem, size = 0x12000, scoped, tag = 'internal scratch']
  %s0 = inlined_call_operand.vmem [shape: bf16[8,108], index: 0, kind: input, shape index: {}]
  %s1 = inlined_call_operand.vmem [shape: bf16[2,108,512], index: 1, kind: input, shape index: {}]
  %s2 = inlined_call_operand.vmem [shape: bf16[2,8,512], index: 2, kind: output, shape index: {0}]
  %s3 = inlined_call_operand.vmem [shape: f32[2,8,1], index: 3, kind: output, shape index: {1}]
  %s4 = inlined_call_operand.vmem [shape: f32[2,8,1], index: 4, kind: output, shape index: {2}]
  %5 = xla_tuple %s2, %s3, %s4
  %s6 = sld [smem:[#allocation0]]
  $region61: #{conv3d_block.2} parent=0
    _
  %s8 = ssub.s32 1, %s6
  %s9 = scalar_select 0, %s8, %s6
  loop: start=0, step=1, limit=4
  $region2: #{conv3d_block.2} parent=0 // loop_pre_header
    _
  $region3: #{conv3d_block.2} parent=0 // loop_header
    %s11 = sphi 0, %s15
    %p12 = scmp.ge.s32.totalorder %s11, 4
    %s18 = sphi 0, %s30
    %s19 = sphi 0, %s26
    %s20 = sphi 0, %s18
    %s21 = sphi 0, %s19
    %s22 = sphi 0, %s20
    %s23 = sphi 0, %s21
    %s31 = sphi 0, %s31
    %s33 = sphi 0, %s31
    %s34 = sphi 0, %s33
    %s48 = sphi 0, %s34
    %s56 = sphi 0, %s58
    %s59 = sphi 0, %s56
    %s60 = sphi 0, %s59
    %s76 = sphi 0, %s60
    %s84 = sphi 0, %s86
    %s87 = sphi 0, %s84
    %s88 = sphi 0, %s87
    %s104 = sphi 0, %s88
    %s110 = sphi 0, %s112
    %s113 = sphi 0, %s110
    %s114 = sphi 0, %s113
    %s130 = sphi 0, %s114
    %s136 = sphi 0, %s138
    %s139 = sphi 0, %s136
    %s140 = sphi 0, %s139
    %s156 = sphi 0, %s140
  $region4: #{conv3d_block.2} parent=0 // loop_header_branch
    %14 = sbr.rel (%p12) target = $region8
  $region5: #{conv3d_block.2} parent=0 // loop_body
    %s16 = ssub.s32 %s11, 1
    %s17 = ssub.s32 %s11, 2
    %s24 = sadd.s32 1, %s19
    %p25 = scmp.ge.s32.totalorder %s24, 1
    %s26 = scalar_select %p25, 0, %s24
    %s27 = sadd.s32 1, %s18
    %s28 = scalar_select %p25, %s27, %s18
    %p29 = scmp.ge.s32.totalorder %s28, 2
    %s30 = scalar_select %p29, 0, %s28
    %s32 = sadd.s32 %s31, 1
    %p35 = scmp.eq.s32.totalorder %s11, 1
    %p36 = scmp.ne.s32.totalorder %s31, %s33
    %p37 = scmp.eq.s32.totalorder %s11, 0
    %p38 = por %p36, %p37
    %p39 = scmp.ne.s32.totalorder %s31, %s33
    %p40 = scmp.eq.s32.totalorder %s16, 1
    %p41 = por %p39, %p40
    %p42 = scmp.ne.s32.totalorder %s33, %s34
    %p43 = scmp.eq.s32.totalorder %s16, 0
    %p44 = por %p42, %p43
    %p45 = scmp.ne.s32.totalorder %s33, %s34
    %p46 = scmp.eq.s32.totalorder %s17, 1
    %p47 = por %p45, %p46
    %p49 = scmp.ne.s32.totalorder %s34, %s48
    %p50 = scmp.eq.s32.totalorder %s17, 0
    %p51 = por %p49, %p50
    %s52 = ssub.s32 %s18, %s30
    %s53 = ssub.s32 %s19, %s26
    %s54 = sor.u32 %s52, %s53
    %p55 = scmp.eq.s32.totalorder %s54, 0
    %s57 = sadd.s32 %s56, 1
    %s58 = scalar_select %p55, %s56, %s57
    %p61 = pneg %p55
    %p62 = scmp.eq.s32.totalorder %s11, 1
    %p63 = por %p61, %p62
    %p64 = scmp.ne.s32.totalorder %s56, %s59
    %p65 = scmp.eq.s32.totalorder %s11, 0
    %p66 = por %p64, %p65
    %p67 = scmp.ne.s32.totalorder %s56, %s59
    %p68 = scmp.eq.s32.totalorder %s16, 1
    %p69 = por %p67, %p68
    %p70 = scmp.ne.s32.totalorder %s59, %s60
    %p71 = scmp.eq.s32.totalorder %s16, 0
    %p72 = por %p70, %p71
    %p73 = scmp.ne.s32.totalorder %s59, %s60
    %p74 = scmp.eq.s32.totalorder %s17, 1
    %p75 = por %p73, %p74
    %p77 = scmp.ne.s32.totalorder %s60, %s76
    %p78 = scmp.eq.s32.totalorder %s17, 0
    %p79 = por %p77, %p78
    %s80 = ssub.s32 %s18, %s30
    %s81 = ssub.s32 %s19, %s26
    %s82 = sor.u32 %s80, %s81
    %p83 = scmp.eq.s32.totalorder %s82, 0
    %s85 = sadd.s32 %s84, 1
    %s86 = scalar_select %p83, %s84, %s85
    %p89 = pneg %p83
    %p90 = scmp.eq.s32.totalorder %s11, 1
    %p91 = por %p89, %p90
    %p92 = scmp.ne.s32.totalorder %s84, %s87
    %p93 = scmp.eq.s32.totalorder %s11, 0
    %p94 = por %p92, %p93
    %p95 = scmp.ne.s32.totalorder %s84, %s87
    %p96 = scmp.eq.s32.totalorder %s16, 1
    %p97 = por %p95, %p96
    %p98 = scmp.ne.s32.totalorder %s87, %s88
    %p99 = scmp.eq.s32.totalorder %s16, 0
    %p100 = por %p98, %p99
    %p101 = scmp.ne.s32.totalorder %s87, %s88
    %p102 = scmp.eq.s32.totalorder %s17, 1
    %p103 = por %p101, %p102
    %p105 = scmp.ne.s32.totalorder %s88, %s104
    %p106 = scmp.eq.s32.totalorder %s17, 0
    %p107 = por %p105, %p106
    %s108 = ssub.s32 %s18, %s30
    %p109 = scmp.eq.s32.totalorder %s108, 0
    %s111 = sadd.s32 %s110, 1
    %s112 = scalar_select %p109, %s110, %s111
    %p115 = pneg %p109
    %p116 = scmp.eq.s32.totalorder %s11, 1
    %p117 = por %p115, %p116
    %p118 = scmp.ne.s32.totalorder %s110, %s113
    %p119 = scmp.eq.s32.totalorder %s11, 0
    %p120 = por %p118, %p119
    %p121 = scmp.ne.s32.totalorder %s110, %s113
    %p122 = scmp.eq.s32.totalorder %s16, 1
    %p123 = por %p121, %p122
    %p124 = scmp.ne.s32.totalorder %s113, %s114
    %p125 = scmp.eq.s32.totalorder %s16, 0
    %p126 = por %p124, %p125
    %p127 = scmp.ne.s32.totalorder %s113, %s114
    %p128 = scmp.eq.s32.totalorder %s17, 1
    %p129 = por %p127, %p128
    %p131 = scmp.ne.s32.totalorder %s114, %s130
    %p132 = scmp.eq.s32.totalorder %s17, 0
    %p133 = por %p131, %p132
    %s134 = ssub.s32 %s18, %s30
    %p135 = scmp.eq.s32.totalorder %s134, 0
    %s137 = sadd.s32 %s136, 1
    %s138 = scalar_select %p135, %s136, %s137
    %p141 = pneg %p135
    %p142 = scmp.eq.s32.totalorder %s11, 1
    %p143 = por %p141, %p142
    %p144 = scmp.ne.s32.totalorder %s136, %s139
    %p145 = scmp.eq.s32.totalorder %s11, 0
    %p146 = por %p144, %p145
    %p147 = scmp.ne.s32.totalorder %s136, %s139
    %p148 = scmp.eq.s32.totalorder %s16, 1
    %p149 = por %p147, %p148
    %p150 = scmp.ne.s32.totalorder %s139, %s140
    %p151 = scmp.eq.s32.totalorder %s16, 0
    %p152 = por %p150, %p151
    %p153 = scmp.ne.s32.totalorder %s139, %s140
    %p154 = scmp.eq.s32.totalorder %s17, 1
    %p155 = por %p153, %p154
    %p157 = scmp.ne.s32.totalorder %s140, %s156
    %p158 = scmp.eq.s32.totalorder %s17, 0
    %p159 = por %p157, %p158
    %p160 = scmp.le.s32.totalorder 1, %s11
    %p161 = scmp.lt.s32.totalorder %s11, 3
    %p162 = pnand %p160, %p161
    %p163 = pneg %p162
    // Predicated region
    $region9: #{conv3d_block.2} parent=5 // pred_check
      _
    $region10: #{conv3d_block.2} parent=5 // pred_check_branch
      %165 = sbr.rel (%p162) target = $region12
    $region11: #{conv3d_block.2} parent=5 // pred_region
      %s166 = ssub.s32 %s11, 1
      // Predicated region
      $region13: #{conv3d_block.2} parent=11 // pred_check
        %p167 = pneg %p44
      $region14: #{conv3d_block.2} parent=11 // pred_check_branch
        %169 = sbr.rel (%p167) target = $region16
      $region15: #{conv3d_block.2} parent=11 // pred_region
        _
      $region16: #{conv3d_block.2} parent=11 // pred_fallthru
        _
    $region12: #{conv3d_block.2} parent=5 // pred_fallthru
      _
    %p170 = scmp.lt.s32.totalorder %s11, 2
    // Predicated region
    $region17: #{conv3d_block.2} parent=5 // pred_check
      %p171 = pneg %p170
    $region18: #{conv3d_block.2} parent=5 // pred_check_branch
      %173 = sbr.rel (%p171) target = $region20
    $region19: #{conv3d_block.2} parent=5 // pred_region
      // Predicated region
      $region21: #{conv3d_block.2} parent=19 // pred_check
        %p174 = pneg %p66
      $region22: #{conv3d_block.2} parent=19 // pred_check_branch
        %176 = sbr.rel (%p174) target = $region24
      $region23: #{conv3d_block.2} parent=19 // pred_region
        %s177 = smul.u32 4, %s19
        %p178 = scmp.lt.s32.totalorder %s18, 1
        %s179 = scalar_select %p178, %s18, 1
        %p180 = scmp.lt.s32.totalorder %s177, 3
        %s181 = scalar_select %p180, %s177, 3
        %s182 = smul.addr %s179, 56
        %s183 = sadd.s32 %s181, %s182
        %s184 = smul.addr %s183, 4
        %s185 = scalar_lea.vmem %s1, %s184
        %s186 = smul.u32 4, %s19
      $region24: #{conv3d_block.2} parent=19 // pred_fallthru
        _
    $region20: #{conv3d_block.2} parent=5 // pred_fallthru
      _
    %p187 = scmp.le.s32.totalorder 1, %s11
    %p188 = scmp.lt.s32.totalorder %s11, 3
    %p189 = pnand %p187, %p188
    %p190 = pneg %p189
    // Predicated region
    $region25: #{conv3d_block.2} parent=5 // pred_check
      _
    $region26: #{conv3d_block.2} parent=5 // pred_check_branch
      %192 = sbr.rel (%p189) target = $region28
    $region27: #{conv3d_block.2} parent=5 // pred_region
      %s193 = ssub.s32 %s11, 1
      %p194 = pneg %p44
      %p195 = pneg %p41
      %s196 = smul.u32 4, %s21
      %p197 = scmp.lt.s32.totalorder %s20, 1
      %s198 = scalar_select %p197, %s20, 1
      %p199 = scmp.lt.s32.totalorder %s196, 3
      %s200 = scalar_select %p199, %s196, 3
      %s201 = smul.addr %s198, 56
      %s202 = sadd.s32 %s200, %s201
      %s203 = smul.addr %s202, 4
      %s204 = scalar_lea.vmem %s1, %s203
      %p205 = pneg %p72
      %p206 = pneg %p69
      %p207 = pneg %p100
      %p208 = pneg %p97
      %s209 = smul.u32 4, %s21
      %p210 = scmp.lt.s32.totalorder %s20, 1
      %s211 = scalar_select %p210, %s20, 1
      %p212 = scmp.lt.s32.totalorder %s209, 3
      %s213 = scalar_select %p212, %s209, 3
      %s214 = smul.addr %s211, 4
      %s215 = sadd.s32 %s213, %s214
      %s216 = smul.addr %s215, 4
      %s217 = scalar_lea.vmem %s2, %s216
      %p218 = pneg %p126
      %p219 = pneg %p123
      %p220 = scmp.lt.s32.totalorder %s20, 1
      %s221 = scalar_select %p220, %s20, 1
      %s222 = smul.addr %s221, 8
      %s223 = scalar_lea.vmem %s3, %s222
      %p224 = pneg %p152
      %p225 = pneg %p149
      %p226 = scmp.lt.s32.totalorder %s20, 1
      %s227 = scalar_select %p226, %s20, 1
      %s228 = smul.addr %s227, 8
      %s229 = scalar_lea.vmem %s4, %s228
      %s230 = smul.u32 4, %s21
      %p231 = scmp.lt.s32.totalorder %s20, 1
      %s232 = scalar_select %p231, %s20, 1
      %p233 = scmp.lt.s32.totalorder %s230, 3
      %s234 = scalar_select %p233, %s230, 3
      %s235 = smul.addr %s232, 56
      %s236 = sadd.s32 %s234, %s235
      %s237 = smul.addr %s236, 4
      %s238 = scalar_lea.vmem %s1, %s237
      %s239 = smul.u32 4, %s21
      %s240 = smul.u32 4, %s21
      %p241 = scmp.lt.s32.totalorder %s20, 1
      %s242 = scalar_select %p241, %s20, 1
      %p243 = scmp.lt.s32.totalorder %s240, 3
      %s244 = scalar_select %p243, %s240, 3
      %s245 = smul.addr %s242, 4
      %s246 = sadd.s32 %s244, %s245
      %s247 = smul.addr %s246, 4
      %s248 = scalar_lea.vmem %s2, %s247
      %s249 = smul.u32 4, %s21
      %p250 = scmp.lt.s32.totalorder %s20, 1
      %s251 = scalar_select %p250, %s20, 1
      %s252 = smul.addr %s251, 8
      %s253 = scalar_lea.vmem %s3, %s252
      %p254 = scmp.lt.s32.totalorder %s20, 1
      %s255 = scalar_select %p254, %s20, 1
      %s256 = smul.addr %s255, 8
      %s257 = scalar_lea.vmem %s4, %s256
      %v259 = vld [vmem:[%s0] sm:$0xf]
      %v260 = vld [vmem:[%s238] sm:$0xff]
      %v261 = vld [vmem:[%s238 + $0x8] sm:$0xff]
      %v262 = vld [vmem:[%s238 + $0x10] sm:$0xff]
      %v263 = vld [vmem:[%s238 + $0x18] sm:$0xff]
      %v264 = vld [vmem:[%s238 + $0x20] sm:$0xff]
      %v265 = vld [vmem:[%s238 + $0x28] sm:$0xff]
      %v266 = vld [vmem:[%s238 + $0x30] sm:$0xff]
      %v267 = vld [vmem:[%s238 + $0x38] sm:$0xff]
      %v268 = vld [vmem:[%s238 + $0x40] sm:$0xff]
      %v269 = vld [vmem:[%s238 + $0x48] sm:$0xff]
      %v270 = vld [vmem:[%s238 + $0x50] sm:$0xff]
      %v271 = vld [vmem:[%s238 + $0x58] sm:$0xff]
      %v272 = vld [vmem:[%s238 + $0x60] sm:$0xff]
      %v273 = vld [vmem:[%s238 + $0x68] sm:$0xff]
      %v274 = vld [vmem:[%s238 + $0x70] sm:$0xff]
      %v275 = vld [vmem:[%s238 + $0x78] sm:$0xff]
      %v276 = vld [vmem:[%s238 + $0x80] sm:$0xff]
      %v277 = vld [vmem:[%s238 + $0x88] sm:$0xff]
      %v278 = vld [vmem:[%s238 + $0x90] sm:$0xff]
      %v279 = vld [vmem:[%s238 + $0x98] sm:$0xff]
      %v280 = vld [vmem:[%s238 + $0xa0] sm:$0xff]
      %v281 = vld [vmem:[%s238 + $0xa8] sm:$0xff]
      %v282 = vld [vmem:[%s238 + $0xb0] sm:$0xff]
      %v283 = vld [vmem:[%s238 + $0xb8] sm:$0xff]
      %v284 = vld [vmem:[%s238 + $0xc0] sm:$0xff]
      %v285 = vld [vmem:[%s238 + $0xc8] sm:$0xff]
      %v286 = vld [vmem:[%s238 + $0xd0] sm:$0x33]
      %v287 = vld [vmem:[%s238 + $0xd8] sm:$0x33]
      %v316 = vunpack.c.l.b16 %v260
      %v317 = vunpack.c.h.b16 %v260
      %v318 = vunpack.c.l.b16 %v261
      %v319 = vunpack.c.h.b16 %v261
      %v320 = vunpack.c.l.b16 %v262
      %v321 = vunpack.c.h.b16 %v262
      %v322 = vunpack.c.l.b16 %v263
      %v323 = vunpack.c.h.b16 %v263
      %v324 = vunpack.c.l.b16 %v264
      %v325 = vunpack.c.h.b16 %v264
      %v326 = vunpack.c.l.b16 %v265
      %v327 = vunpack.c.h.b16 %v265
      %v328 = vunpack.c.l.b16 %v266
      %v329 = vunpack.c.h.b16 %v266
      %v330 = vunpack.c.l.b16 %v267
      %v331 = vunpack.c.h.b16 %v267
      %v332 = vunpack.c.l.b16 %v268
      %v333 = vunpack.c.h.b16 %v268
      %v334 = vunpack.c.l.b16 %v269
      %v335 = vunpack.c.h.b16 %v269
      %v336 = vunpack.c.l.b16 %v270
      %v337 = vunpack.c.h.b16 %v270
      %v338 = vunpack.c.l.b16 %v271
      %v339 = vunpack.c.h.b16 %v271
      %v340 = vunpack.c.l.b16 %v272
      %v341 = vunpack.c.h.b16 %v272
      %v342 = vunpack.c.l.b16 %v273
      %v343 = vunpack.c.h.b16 %v273
      %v344 = vunpack.c.l.b16 %v274
      %v345 = vunpack.c.h.b16 %v274
      %v346 = vunpack.c.l.b16 %v275
      %v347 = vunpack.c.h.b16 %v275
      %v348 = vunpack.c.l.b16 %v276
      %v349 = vunpack.c.h.b16 %v276
      %v350 = vunpack.c.l.b16 %v277
      %v351 = vunpack.c.h.b16 %v277
      %v352 = vunpack.c.l.b16 %v278
      %v353 = vunpack.c.h.b16 %v278
      %v354 = vunpack.c.l.b16 %v279
      %v355 = vunpack.c.h.b16 %v279
      %v356 = vunpack.c.l.b16 %v280
      %v357 = vunpack.c.h.b16 %v280
      %v358 = vunpack.c.l.b16 %v281
      %v359 = vunpack.c.h.b16 %v281
      %v360 = vunpack.c.l.b16 %v282
      %v361 = vunpack.c.h.b16 %v282
      %v362 = vunpack.c.l.b16 %v283
      %v363 = vunpack.c.h.b16 %v283
      %v364 = vunpack.c.l.b16 %v284
      %v365 = vunpack.c.h.b16 %v284
      %v366 = vunpack.c.l.b16 %v285
      %v367 = vunpack.c.h.b16 %v285
      %v368 = vunpack.c.l.b16 %v286
      %v369 = vunpack.c.h.b16 %v286
      %v370 = vunpack.c.l.b16 %v287
      %v371 = vunpack.c.h.b16 %v287
      %v372 = vpack.c.b16 %v320, %v316
      %v373 = vpack.c.b16 %v321, %v317
      %v374 = vpack.c.b16 %v322, %v318
      %v375 = vpack.c.b16 %v323, %v319
      %v376 = vpack.c.b16 %v328, %v324
      %v377 = vpack.c.b16 %v329, %v325
      %v378 = vpack.c.b16 %v330, %v326
      %v379 = vpack.c.b16 %v331, %v327
      %v380 = vpack.c.b16 %v336, %v332
      %v381 = vpack.c.b16 %v337, %v333
      %v382 = vpack.c.b16 %v338, %v334
      %v383 = vpack.c.b16 %v339, %v335
      %v384 = vpack.c.b16 %v344, %v340
      %v385 = vpack.c.b16 %v345, %v341
      %v386 = vpack.c.b16 %v346, %v342
      %v387 = vpack.c.b16 %v347, %v343
      %v388 = vpack.c.b16 %v352, %v348
      %v389 = vpack.c.b16 %v353, %v349
      %v390 = vpack.c.b16 %v354, %v350
      %v391 = vpack.c.b16 %v355, %v351
      %v392 = vpack.c.b16 %v360, %v356
      %v393 = vpack.c.b16 %v361, %v357
      %v394 = vpack.c.b16 %v362, %v358
      %v395 = vpack.c.b16 %v363, %v359
      %v396 = vpack.c.b16 %v368, %v364
      %v397 = vpack.c.b16 %v369, %v365
      %v398 = vpack.c.b16 %v370, %v366
      %v399 = vpack.c.b16 %v371, %v367
      %vm424 = vcmask 883712
      %v426 = vsel %vm424, %v259, 0
      %vm428 = vcmask 1045504
      %v430 = vsel %vm428, %v396, 0
      %v433 = vsel %vm428, %v397, 0
      %v436 = vsel %vm428, %v398, 0
      %v439 = vsel %vm428, %v399, 0
      %441 = vmatprep.subr.bf16.mxu0 %v373
      %442 = vmatpush1.bf16.msra.mxu0 %v372
      %443 = vmatprep.subr.bf16.mxu0 %v377
      %444 = vmatpush1.bf16.msra.mxu0 %v376
      %445 = vmatprep.subr.bf16.mxu0 %v381
      %446 = vmatpush1.bf16.msra.mxu0 %v380
      %447 = vmatprep.subr.bf16.mxu0 %v385
      %448 = vmatpush1.bf16.msra.mxu0 %v384
      %449 = vmatprep.subr.bf16.mxu0 %v389
      %450 = vmatpush1.bf16.msra.mxu0 %v388
      %451 = vmatprep.subr.bf16.mxu0 %v393
      %452 = vmatpush1.bf16.msra.mxu0 %v392
      %453 = vmatprep.subr.bf16.mxu0 %v433
      %454 = vmatpush1.bf16.msra.mxu0 %v430
      %455 = vmatprep.subr.bf16.mxu0 0
      %456 = vmatpush1.bf16.msra.mxu0 0
      %457 = vmatprep.subr.bf16.mxu0 0
      %458 = vmatpush1.bf16.msra.mxu0 0
      %459 = vmatprep.subr.bf16.mxu0 0
      %460 = vmatpush1.bf16.msra.mxu0 0
      %461 = vmatprep.subr.bf16.mxu0 0
      %462 = vmatpush1.bf16.msra.mxu0 0
      %463 = vmatprep.subr.bf16.mxu0 0
      %464 = vmatpush1.bf16.msra.mxu0 0
      %465 = vmatprep.subr.bf16.mxu0 0
      %466 = vmatpush1.bf16.msra.mxu0 0
      %467 = vmatprep.subr.bf16.mxu0 0
      %468 = vmatpush1.bf16.msra.mxu0 0
      %469 = vmatprep.subr.bf16.mxu0 0
      %470 = vmatpush1.bf16.msra.mxu0 0
      %471 = vmatprep.subr.bf16.mxu0 0
      %472 = vmatpush1.bf16.msra.mxu0 0
      %473 = vmatprep.mubr.bf16.mxu0 0
      %474 = vmatmul.mubr.bf16.gmra.mrb[0].mxu0 %v426
      %v475 = vpop.f32.mrb[0].mxu0
      %v476 = vadd.f32 0.0, %v475
      %v477 = vpop.f32.mrb[0].mxu0
      %v478 = vadd.f32 0.0, %v477
      %v479 = vpop.f32.mrb[0].mxu0
      %v480 = vpop.f32.mrb[0].mxu0
      %481 = vdwg.mxu0
      %482 = vmatprep.subr.bf16.mxu0 %v375
      %483 = vmatpush1.bf16.msra.mxu0 %v374
      %484 = vmatprep.subr.bf16.mxu0 %v379
      %485 = vmatpush1.bf16.msra.mxu0 %v378
      %486 = vmatprep.subr.bf16.mxu0 %v383
      %487 = vmatpush1.bf16.msra.mxu0 %v382
      %488 = vmatprep.subr.bf16.mxu0 %v387
      %489 = vmatpush1.bf16.msra.mxu0 %v386
      %490 = vmatprep.subr.bf16.mxu0 %v391
      %491 = vmatpush1.bf16.msra.mxu0 %v390
      %492 = vmatprep.subr.bf16.mxu0 %v395
      %493 = vmatpush1.bf16.msra.mxu0 %v394
      %494 = vmatprep.subr.bf16.mxu0 %v439
      %495 = vmatpush1.bf16.msra.mxu0 %v436
      %496 = vmatprep.subr.bf16.mxu0 0
      %497 = vmatpush1.bf16.msra.mxu0 0
      %498 = vmatprep.subr.bf16.mxu0 0
      %499 = vmatpush1.bf16.msra.mxu0 0
      %500 = vmatprep.subr.bf16.mxu0 0
      %501 = vmatpush1.bf16.msra.mxu0 0
      %502 = vmatprep.subr.bf16.mxu0 0
      %503 = vmatpush1.bf16.msra.mxu0 0
      %504 = vmatprep.subr.bf16.mxu0 0
      %505 = vmatpush1.bf16.msra.mxu0 0
      %506 = vmatprep.subr.bf16.mxu0 0
      %507 = vmatpush1.bf16.msra.mxu0 0
      %508 = vmatprep.subr.bf16.mxu0 0
      %509 = vmatpush1.bf16.msra.mxu0 0
      %510 = vmatprep.subr.bf16.mxu0 0
      %511 = vmatpush1.bf16.msra.mxu0 0
      %512 = vmatprep.subr.bf16.mxu0 0
      %513 = vmatpush1.bf16.msra.mxu0 0
      %514 = vmatprep.mubr.bf16.mxu0 0
      %515 = vmatmul.mubr.bf16.gmra.mrb[0].mxu0 %v426
      %v516 = vpop.f32.mrb[0].mxu0
      %v517 = vadd.f32 0.0, %v516
      %v518 = vpop.f32.mrb[0].mxu0
      %v519 = vadd.f32 0.0, %v518
      %v520 = vpop.f32.mrb[0].mxu0
      %v521 = vpop.f32.mrb[0].mxu0
      %522 = vdwg.mxu0
      %v523 = vpack.c.bf16 %v476, %v476
      %v524 = vpack.c.bf16 %v478, %v478
      %v525 = vpack.c.bf16 %v517, %v517
      %v526 = vpack.c.bf16 %v519, %v519
      %v531 = vunpack.c.l.b16 %v523
      %v532 = vunpack.c.l.b16 %v524
      %v533 = vunpack.c.l.b16 %v525
      %v534 = vunpack.c.l.b16 %v526
      %v535 = vpack.c.b16 %v532, %v531
      %v536 = vpack.c.b16 %v534, %v533
      %539 = vst [vmem:[%s248] sm:$0xff] %v535
      %540 = vst [vmem:[%s248 + $0x8] sm:$0xff] %v536
      %p541 = scmp.eq.s32.totalorder %s21, 0
      // Predicated region
      $region29: #{conv3d_block.2} parent=27 // pred_check
        %p542 = pneg %p541
      $region30: #{conv3d_block.2} parent=27 // pred_check_branch
        %544 = sbr.rel (%p542) target = $region32
      $region31: #{conv3d_block.2} parent=27 // pred_region
        %vm545 = vcmask 7168
        %546 = vst.msk [vmem:[%s253] sm:$0xff] %vm545, 0.0
        %547 = vst.msk [vmem:[%s257] sm:$0xff] %vm545, 0.0
      $region32: #{conv3d_block.2} parent=27 // pred_fallthru
        _
      %v548 = vld [vmem:[%s253] sm:$0xff]
      %v549 = vadd.f32 %v476, %v478
      %v550 = vadd.f32 %v549, %v517
      %v551 = vadd.f32 %v550, %v519
      %552 = vadd.xlane.f32.xlu0 %v551
      %v553 = vpop.xlane.xlu0 %552
      %v554 = vadd.f32 %v548, %v553
      %vm555 = vcmask 7168
      %556 = vst.msk [vmem:[%s253] sm:$0xff] %vm555, %v554
      %v557 = vld [vmem:[%s257] sm:$0xff]
      %v558 = vmul.f32 %v476, %v476
      %v559 = vmul.f32 %v478, %v478
      %v560 = vmul.f32 %v517, %v517
      %v561 = vmul.f32 %v519, %v519
      %v562 = vadd.f32 %v558, %v559
      %v563 = vadd.f32 %v562, %v560
      %v564 = vadd.f32 %v563, %v561
      %565 = vadd.xlane.f32.xlu0 %v564
      %v566 = vpop.xlane.xlu0 %565
      %v567 = vadd.f32 %v557, %v566
      %568 = vst.msk [vmem:[%s257] sm:$0xff] %vm555, %v567
      %s569 = smul.u32 4, %s21
      %p570 = scmp.lt.s32.totalorder %s20, 1
      %s571 = scalar_select %p570, %s20, 1
      %p572 = scmp.lt.s32.totalorder %s569, 3
      %s573 = scalar_select %p572, %s569, 3
      %s574 = smul.addr %s571, 4
      %s575 = sadd.s32 %s573, %s574
      %s576 = smul.addr %s575, 4
      %s577 = scalar_lea.vmem %s2, %s576
      %p578 = scmp.lt.s32.totalorder %s20, 1
      %s579 = scalar_select %p578, %s20, 1
      %s580 = smul.addr %s579, 8
      %s581 = scalar_lea.vmem %s3, %s580
      %p582 = scmp.lt.s32.totalorder %s20, 1
      %s583 = scalar_select %p582, %s20, 1
      %s584 = smul.addr %s583, 8
      %s585 = scalar_lea.vmem %s4, %s584
      // Predicated region
      $region33: #{conv3d_block.2} parent=27 // pred_check
        %p586 = pneg %p97
      $region34: #{conv3d_block.2} parent=27 // pred_check_branch
        %588 = sbr.rel (%p586) target = $region36
      $region35: #{conv3d_block.2} parent=27 // pred_region
        %s589 = smul.u32 4, %s21
      $region36: #{conv3d_block.2} parent=27 // pred_fallthru
        _
      // Predicated region
      $region37: #{conv3d_block.2} parent=27 // pred_check
        %p590 = pneg %p123
      $region38: #{conv3d_block.2} parent=27 // pred_check_branch
        %592 = sbr.rel (%p590) target = $region40
      $region39: #{conv3d_block.2} parent=27 // pred_region
        _
      $region40: #{conv3d_block.2} parent=27 // pred_fallthru
        _
      // Predicated region
      $region41: #{conv3d_block.2} parent=27 // pred_check
        %p593 = pneg %p149
      $region42: #{conv3d_block.2} parent=27 // pred_check_branch
        %595 = sbr.rel (%p593) target = $region44
      $region43: #{conv3d_block.2} parent=27 // pred_region
        _
      $region44: #{conv3d_block.2} parent=27 // pred_fallthru
        _
    $region28: #{conv3d_block.2} parent=5 // pred_fallthru
      _
    %p596 = scmp.le.s32.totalorder 2, %s11
    // Predicated region
    $region45: #{conv3d_block.2} parent=5 // pred_check
      %p597 = pneg %p596
    $region46: #{conv3d_block.2} parent=5 // pred_check_branch
      %599 = sbr.rel (%p597) target = $region48
    $region47: #{conv3d_block.2} parent=5 // pred_region
      %s600 = ssub.s32 %s11, 2
      // Predicated region
      $region49: #{conv3d_block.2} parent=47 // pred_check
        %p601 = pneg %p103
      $region50: #{conv3d_block.2} parent=47 // pred_check_branch
        %603 = sbr.rel (%p601) target = $region52
      $region51: #{conv3d_block.2} parent=47 // pred_region
        %s604 = smul.u32 4, %s23
        %p605 = scmp.lt.s32.totalorder %s22, 1
        %s606 = scalar_select %p605, %s22, 1
        %p607 = scmp.lt.s32.totalorder %s604, 3
        %s608 = scalar_select %p607, %s604, 3
        %s609 = smul.addr %s606, 4
        %s610 = sadd.s32 %s608, %s609
        %s611 = smul.addr %s610, 4
        %s612 = scalar_lea.vmem %s2, %s611
      $region52: #{conv3d_block.2} parent=47 // pred_fallthru
        _
      // Predicated region
      $region53: #{conv3d_block.2} parent=47 // pred_check
        %p613 = pneg %p129
      $region54: #{conv3d_block.2} parent=47 // pred_check_branch
        %615 = sbr.rel (%p613) target = $region56
      $region55: #{conv3d_block.2} parent=47 // pred_region
        %p616 = scmp.lt.s32.totalorder %s22, 1
        %s617 = scalar_select %p616, %s22, 1
        %s618 = smul.addr %s617, 8
        %s619 = scalar_lea.vmem %s3, %s618
      $region56: #{conv3d_block.2} parent=47 // pred_fallthru
        _
      // Predicated region
      $region57: #{conv3d_block.2} parent=47 // pred_check
        %p620 = pneg %p155
      $region58: #{conv3d_block.2} parent=47 // pred_check_branch
        %622 = sbr.rel (%p620) target = $region60
      $region59: #{conv3d_block.2} parent=47 // pred_region
        %p623 = scmp.lt.s32.totalorder %s22, 1
        %s624 = scalar_select %p623, %s22, 1
        %s625 = smul.addr %s624, 8
        %s626 = scalar_lea.vmem %s4, %s625
      $region60: #{conv3d_block.2} parent=47 // pred_fallthru
        _
    $region48: #{conv3d_block.2} parent=5 // pred_fallthru
      _
  $region6: #{conv3d_block.2} parent=0 // loop_footer
    %s15 = sadd.s32 1, %s11
  $region7: #{conv3d_block.2} parent=0 // loop_footer_branch
    %10 = sbr.rel target = $region3
  $region8: #{conv3d_block.2} parent=0 // loop_exit
    _

</llo_original>
